<compile_context>
chip_gen: v7x
topology: tpu7x:2x2x1
jax: 0.10.0
libtpu: 0.0.40
codegen_flags: <defaults>
</compile_context>

<pallas_src>
import jax
import jax.numpy as jnp
from jax import lax
from jax.experimental import pallas as pl
from jax.experimental.pallas import tpu as pltpu

LN_EPS = 1e-5  # torch.nn.LayerNorm default


def _round_up(x, m):
    return (x + m - 1) // m * m


def _usable_vmem_bytes():
    """Generation-aware usable VMEM (physical capacity minus headroom)."""
    cap = 128 * 1024 * 1024
    try:
        cap = int(getattr(pltpu.get_tpu_info(), "vmem_capacity_bytes", cap))
    except Exception:  # interpret mode / unusual runtimes
        pass
    # ~80% of physical and always leave >=16 MiB for Mosaic internals.
    # v5e/v6e (128 MiB) -> ~102 MiB usable; v7x (64 MiB) -> ~48 MiB usable.
    return max(min(int(0.8 * cap), cap - 16 * 1024 * 1024), 8 * 1024 * 1024)


def _vmem_need_bytes(tm, d, tn, h, x_dtype, w_dtype, out_dtype):
    """Bytes actually needed: pipelined tiles + resident operands + in-kernel
    f32 temporaries + a small fixed allowance for Mosaic scratch."""
    xb = jnp.dtype(x_dtype).itemsize
    wb = jnp.dtype(w_dtype).itemsize
    ob = jnp.dtype(out_dtype).itemsize
    w_bufs = 1 if tn >= h else 2              # resident weight -> Buffered(1)
    need = (
        2 * tm * d * xb                       # double-buffered x row tile
        + 2 * tm * tn * ob                    # double-buffered output tile
        + w_bufs * d * tn * wb                # weight tile(s)
        + (2 * d + tn) * 4                    # gamma, beta, bias (single buf)
        + (2 * tm * d + tm * tn) * 4          # f32 temps: x/y + accumulator
        + (2 << 20)                           # Mosaic internal scratch headroom
    )
    return int(need)


def _choose_tiles(n, d, h, x_dtype, w_dtype, out_dtype):
    """Pick (tm, tn, vmem_limit): tm large to amortize grid-step overhead but
    capped so >=2 row tiles exist (v7x megacore); tn = full h when small."""
    usable = _usable_vmem_bytes()
    tn = h if h <= 512 else 512
    tm = min(512, _round_up(max(n, 1), 8))
    if n > 8:
        tm = min(tm, _round_up((n + 1) // 2, 8))   # guarantee >= 2 row tiles
    while _vmem_need_bytes(tm, d, tn, h, x_dtype, w_dtype, out_dtype) > usable and tm > 8:
        tm = max(8, _round_up(tm // 2, 8))
    while _vmem_need_bytes(tm, d, tn, h, x_dtype, w_dtype, out_dtype) > usable and tn > 128:
        tn = max(128, _round_up(tn // 2, 128))
    need = _vmem_need_bytes(tm, d, tn, h, x_dtype, w_dtype, out_dtype)
    return tm, tn, min(usable, max(need, 8 * 1024 * 1024))


def _choose_row_tile(n, d, x_dtype):
    """Row tile + VMEM budget for the LN-only (no weight) kernel."""
    usable = _usable_vmem_bytes()
    xb = jnp.dtype(x_dtype).itemsize

    def need(tm_):
        return int(4 * tm_ * d * xb + 2 * d * 4 + 2 * tm_ * d * 4 + (2 << 20))

    tm = min(512, _round_up(max(n, 1), 8))
    if n > 8:
        tm = min(tm, _round_up((n + 1) // 2, 8))
    while need(tm) > usable and tm > 8:
        tm = max(8, _round_up(tm // 2, 8))
    return tm, min(usable, max(need(tm), 8 * 1024 * 1024))


def _spec(shape, index_map, *, resident=False):
    """BlockSpec; resident (constant-index) operands are single-buffered."""
    if resident:
        return pl.BlockSpec(shape, index_map, pipeline_mode=pl.Buffered(1))
    return pl.BlockSpec(shape, index_map)


# ---------------------- fused LayerNorm + Linear kernel ----------------------
def _prenorm_linear_kernel(x_ref, gamma_ref, beta_ref, w_ref, b_ref, o_ref):
    # Single-pass LN stats in f32: var = E[x^2] - E[x]^2 (biased, like torch).
    x = x_ref[...].astype(jnp.float32)                            # (tm, d)
    mean = jnp.mean(x, axis=-1, keepdims=True)
    var = jnp.maximum(jnp.mean(x * x, axis=-1, keepdims=True) - mean * mean, 0.0)
    y = (x - mean) * lax.rsqrt(var + LN_EPS)
    y = y * gamma_ref[...].astype(jnp.float32) + beta_ref[...].astype(jnp.float32)
    acc = jnp.dot(y.astype(w_ref.dtype), w_ref[...],
                  preferred_element_type=jnp.float32)             # (tm, tn) MXU
    o_ref[...] = (acc + b_ref[...].astype(jnp.float32)).astype(o_ref.dtype)


def prenorm_linear_pallas(x2d, gamma, beta, w, b):
    """out = LayerNorm(x2d; gamma, beta) @ w + b, fused in one pallas_call."""
    n, d = x2d.shape
    d2, h = w.shape
    assert d == d2
    tm, tn, vmem_limit = _choose_tiles(n, d, h, x2d.dtype, w.dtype, x2d.dtype)
    rows, cols = pl.cdiv(n, tm), pl.cdiv(h, tn)
    w_resident = cols == 1
    return pl.pallas_call(
        _prenorm_linear_kernel,
        out_shape=jax.ShapeDtypeStruct((n, h), x2d.dtype),
        grid_spec=pltpu.PrefetchScalarGridSpec(
            num_scalar_prefetch=0,
            grid=(rows, cols),
            in_specs=[
                pl.BlockSpec((tm, d), lambda i, j: (i, 0)),              # rows
                _spec((1, d), lambda i, j: (0, 0), resident=True),       # gamma
                _spec((1, d), lambda i, j: (0, 0), resident=True),       # beta
                _spec((d, tn), lambda i, j: (0, j), resident=w_resident),  # W
                _spec((1, tn), lambda i, j: (0, j), resident=w_resident),  # bias
            ],
            out_specs=pl.BlockSpec((tm, tn), lambda i, j: (i, j)),
        ),
        compiler_params=pltpu.CompilerParams(
            dimension_semantics=("parallel", "parallel"),
            vmem_limit_bytes=vmem_limit),
    )(x2d, gamma.reshape(1, d), beta.reshape(1, d), w, b.reshape(1, h))


# --------------------- generic LayerNorm kernel (un-fused) -------------------
def _layernorm_kernel(x_ref, gamma_ref, beta_ref, o_ref):
    x = x_ref[...].astype(jnp.float32)
    mean = jnp.mean(x, axis=-1, keepdims=True)
    var = jnp.maximum(jnp.mean(x * x, axis=-1, keepdims=True) - mean * mean, 0.0)
    y = (x - mean) * lax.rsqrt(var + LN_EPS)
    y = y * gamma_ref[...].astype(jnp.float32) + beta_ref[...].astype(jnp.float32)
    o_ref[...] = y.astype(o_ref.dtype)


def layernorm_pallas(x2d, gamma, beta):
    n, d = x2d.shape
    tm, vmem_limit = _choose_row_tile(n, d, x2d.dtype)
    return pl.pallas_call(
        _layernorm_kernel,
        out_shape=jax.ShapeDtypeStruct((n, d), x2d.dtype),
        grid_spec=pltpu.PrefetchScalarGridSpec(
            num_scalar_prefetch=0,
            grid=(pl.cdiv(n, tm),),
            in_specs=[
                pl.BlockSpec((tm, d), lambda i: (i, 0)),
                _spec((1, d), lambda i: (0, 0), resident=True),
                _spec((1, d), lambda i: (0, 0), resident=True),
            ],
            out_specs=pl.BlockSpec((tm, d), lambda i: (i, 0)),
        ),
        compiler_params=pltpu.CompilerParams(
            dimension_semantics=("parallel",),
            vmem_limit_bytes=vmem_limit),
    )(x2d, gamma.reshape(1, d), beta.reshape(1, d))


# ----------------------------- Linear (fn) kernel ----------------------------
def _linear_kernel(x_ref, w_ref, b_ref, o_ref):
    acc = jnp.dot(x_ref[...].astype(w_ref.dtype), w_ref[...],
                  preferred_element_type=jnp.float32)
    o_ref[...] = (acc + b_ref[...].astype(jnp.float32)).astype(o_ref.dtype)


def linear_pallas(x2d, w, b):
    n, d = x2d.shape
    d2, h = w.shape
    assert d == d2
    tm, tn, vmem_limit = _choose_tiles(n, d, h, x2d.dtype, w.dtype, x2d.dtype)
    rows, cols = pl.cdiv(n, tm), pl.cdiv(h, tn)
    w_resident = cols == 1
    return pl.pallas_call(
        _linear_kernel,
        out_shape=jax.ShapeDtypeStruct((n, h), x2d.dtype),
        grid_spec=pltpu.PrefetchScalarGridSpec(
            num_scalar_prefetch=0,
            grid=(rows, cols),
            in_specs=[
                pl.BlockSpec((tm, d), lambda i, j: (i, 0)),
                _spec((d, tn), lambda i, j: (0, j), resident=w_resident),
                _spec((1, tn), lambda i, j: (0, j), resident=w_resident),
            ],
            out_specs=pl.BlockSpec((tm, tn), lambda i, j: (i, j)),
        ),
        compiler_params=pltpu.CompilerParams(
            dimension_semantics=("parallel", "parallel"),
            vmem_limit_bytes=vmem_limit),
    )(x2d, w, b.reshape(1, h))


# ------------------------------ module wrappers ------------------------------
class PallasLinear:
    """Linear(dim -> hidden) whose matmul runs as a Pallas kernel.
    Pass bf16 w/b for the fast MXU path (accumulation stays f32)."""

    def __init__(self, w, b):
        self.w = w  # (d, h)
        self.b = b  # (h,)

    def __call__(self, y):
        lead = y.shape[:-1]
        out2d = linear_pallas(y.reshape(-1, y.shape[-1]), self.w, self.b)
        return out2d.reshape(*lead, self.w.shape[-1])


class PreNorm:
    """JAX/Pallas equivalent of:
         def forward(self, x, **kwargs): return self.fn(self.norm(x), **kwargs)

    When `fn` is a PallasLinear (and no kwargs), LayerNorm + matmul fuse into a
    single pallas_call; otherwise the LayerNorm kernel runs and `fn` is applied
    to its output.
    """

    def __init__(self, dim, fn, gamma=None, beta=None):
        self.dim = dim
        self.fn = fn
        # nn.LayerNorm init: weight=1, bias=0 (deterministic)
        self.gamma = jnp.ones((dim,), jnp.float32) if gamma is None else gamma
        self.beta = jnp.zeros((dim,), jnp.float32) if beta is None else beta

    def __call__(self, x, **kwargs):
        lead = x.shape[:-1]
        d = x.shape[-1]
        x2d = x.reshape(-1, d)
        if isinstance(self.fn, PallasLinear) and not kwargs:
            out2d = prenorm_linear_pallas(x2d, self.gamma, self.beta,
                                          self.fn.w, self.fn.b)
            return out2d.reshape(*lead, self.fn.w.shape[-1])
        y2d = layernorm_pallas(x2d, self.gamma, self.beta)
        return self.fn(y2d.reshape(*lead, d), **kwargs)


# ------------------------------------ main -----------------------------------
if __name__ == "__main__":
    key = jax.random.PRNGKey(0)
    # seq=9 makes batch*seq=18 NOT a multiple of the row tile, exercising the
    # ragged-tail (masked-store) path that replaced pad/slice.
    batch, seq, dim, hidden = 2, 9, 32, 32

    kx, kw, kb, kg, kbeta = jax.random.split(key, 5)
    x = jax.random.normal(kx, (batch, seq, dim), jnp.float32)

    # deterministic fn parameters (Linear dim -> hidden)
    w = jax.random.normal(kw, (dim, hidden), jnp.float32) * 0.05
    b = jax.random.normal(kb, (hidden,), jnp.float32) * 0.05

    # non-trivial LayerNorm affine params for a stricter check
    gamma = 1.0 + 0.1 * jax.random.normal(kg, (dim,), jnp.float32)
    beta = 0.1 * jax.random.normal(kbeta, (dim,), jnp.float32)

    module = PreNorm(dim, PallasLinear(w, b), gamma=gamma, beta=beta)
    out = jax.block_until_ready(module(x))

    # reference in plain JAX (mirrors torch.nn.LayerNorm + Linear)
    mean = jnp.mean(x, axis=-1, keepdims=True)
    var = jnp.mean((x - mean) ** 2, axis=-1, keepdims=True)
    y_ref = (x - mean) / jnp.sqrt(var + LN_EPS) * gamma + beta
    out_ref = y_ref @ w + b

    assert out.shape == (batch, seq, hidden)
    assert jnp.allclose(out, out_ref, atol=1e-4, rtol=1e-4), "fused path mismatch"

    # also check the generic (un-fused) path used for arbitrary fn
    def generic_fn(y):
        return PallasLinear(w, b)(y)

    out2 = jax.block_until_ready(PreNorm(dim, generic_fn, gamma=gamma, beta=beta)(x))
    assert jnp.allclose(out2, out_ref, atol=1e-4, rtol=1e-4), "generic path mismatch"

    print("KERNEL_OK")
</pallas_src>

<mosaic_0001>
module attributes {stable_mosaic.version = 11 : i64} {
  func.func @_prenorm_linear_kernel(%arg0: i32, %arg1: i32, %arg2: memref<16x32xf32, #tpu.memory_space<vmem>>, %arg3: memref<1x32xf32, #tpu.memory_space<vmem>>, %arg4: memref<1x32xf32, #tpu.memory_space<vmem>>, %arg5: memref<32x32xf32, #tpu.memory_space<vmem>>, %arg6: memref<1x32xf32, #tpu.memory_space<vmem>>, %arg7: memref<16x32xf32, #tpu.memory_space<vmem>>) attributes {dimension_semantics = [#tpu.dimension_semantics<parallel>, #tpu.dimension_semantics<parallel>], iteration_bounds = array<i64: 2, 1>, scalar_prefetch = 0 : i64, scratch_operands = 0 : i64, tpu.core_type = #tpu.core_type<tc>, window_params = [{transform_indices = @transform_0, window_bounds = array<i64: 16, 32>}, {pipeline_mode = #tpu.pipeline_mode<synchronous>, transform_indices = @transform_1, window_bounds = array<i64: 1, 32>}, {pipeline_mode = #tpu.pipeline_mode<synchronous>, transform_indices = @transform_2, window_bounds = array<i64: 1, 32>}, {pipeline_mode = #tpu.pipeline_mode<synchronous>, transform_indices = @transform_3, window_bounds = array<i64: 32, 32>}, {pipeline_mode = #tpu.pipeline_mode<synchronous>, transform_indices = @transform_4, window_bounds = array<i64: 1, 32>}, {transform_indices = @transform_5, window_bounds = array<i64: 16, 32>}]} {
    %c0 = arith.constant 0 : index
    %c0_0 = arith.constant 0 : index
    %0 = vector.load %arg2[%c0, %c0_0] : memref<16x32xf32, #tpu.memory_space<vmem>>, vector<16x32xf32>
    %cst = arith.constant dense<0.000000e+00> : vector<16xf32>
    %1 = vector.multi_reduction <add>, %0, %cst [1] : vector<16x32xf32> to vector<16xf32>
    %2 = vector.shape_cast %1 : vector<16xf32> to vector<16x1xf32>
    %cst_1 = arith.constant 3.200000e+01 : f32
    %3 = vector.broadcast %cst_1 : f32 to vector<16x1xf32>
    %4 = arith.divf %2, %3 : vector<16x1xf32>
    %5 = arith.mulf %0, %0 : vector<16x32xf32>
    %cst_2 = arith.constant dense<0.000000e+00> : vector<16xf32>
    %6 = vector.multi_reduction <add>, %5, %cst_2 [1] : vector<16x32xf32> to vector<16xf32>
    %7 = vector.shape_cast %6 : vector<16xf32> to vector<16x1xf32>
    %cst_3 = arith.constant 3.200000e+01 : f32
    %8 = vector.broadcast %cst_3 : f32 to vector<16x1xf32>
    %9 = arith.divf %7, %8 : vector<16x1xf32>
    %10 = arith.mulf %4, %4 : vector<16x1xf32>
    %11 = arith.subf %9, %10 : vector<16x1xf32>
    %cst_4 = arith.constant 0.000000e+00 : f32
    %12 = vector.broadcast %cst_4 : f32 to vector<16x1xf32>
    %13 = arith.maximumf %11, %12 : vector<16x1xf32>
    %14 = vector.broadcast %4 : vector<16x1xf32> to vector<16x32xf32>
    %15 = arith.subf %0, %14 : vector<16x32xf32>
    %cst_5 = arith.constant 9.99999974E-6 : f32
    %16 = vector.broadcast %cst_5 : f32 to vector<16x1xf32>
    %17 = arith.addf %13, %16 : vector<16x1xf32>
    %18 = math.rsqrt %17 : vector<16x1xf32>
    %19 = vector.broadcast %18 : vector<16x1xf32> to vector<16x32xf32>
    %20 = arith.mulf %15, %19 : vector<16x32xf32>
    %c0_6 = arith.constant 0 : index
    %c0_7 = arith.constant 0 : index
    %21 = vector.load %arg3[%c0_6, %c0_7] : memref<1x32xf32, #tpu.memory_space<vmem>>, vector<1x32xf32>
    %22 = vector.broadcast %21 : vector<1x32xf32> to vector<16x32xf32>
    %23 = arith.mulf %20, %22 : vector<16x32xf32>
    %c0_8 = arith.constant 0 : index
    %c0_9 = arith.constant 0 : index
    %24 = vector.load %arg4[%c0_8, %c0_9] : memref<1x32xf32, #tpu.memory_space<vmem>>, vector<1x32xf32>
    %25 = vector.broadcast %24 : vector<1x32xf32> to vector<16x32xf32>
    %26 = arith.addf %23, %25 : vector<16x32xf32>
    %c0_10 = arith.constant 0 : index
    %c0_11 = arith.constant 0 : index
    %27 = vector.load %arg5[%c0_10, %c0_11] : memref<32x32xf32, #tpu.memory_space<vmem>>, vector<32x32xf32>
    %cst_12 = arith.constant dense<0.000000e+00> : vector<16x32xf32>
    %28 = tpu.matmul %26, %27, %cst_12 {dimension_numbers = #tpu.dot_dimension_numbers<[1], [0], [0], [1], [0, 0, 1, 1], [], []>} : vector<16x32xf32>, vector<32x32xf32>, vector<16x32xf32> -> vector<16x32xf32>
    %c0_13 = arith.constant 0 : index
    %c0_14 = arith.constant 0 : index
    %29 = vector.load %arg6[%c0_13, %c0_14] : memref<1x32xf32, #tpu.memory_space<vmem>>, vector<1x32xf32>
    %30 = vector.broadcast %29 : vector<1x32xf32> to vector<16x32xf32>
    %31 = arith.addf %28, %30 : vector<16x32xf32>
    %c0_15 = arith.constant 0 : index
    %c0_16 = arith.constant 0 : index
    %32 = vector.load %arg7[%c0_15, %c0_16] : memref<16x32xf32, #tpu.memory_space<vmem>>, vector<16x32xf32>
    tpu.vector_store %arg7[%c0_15, %c0_16], %31 {strides = array<i32>} : memref<16x32xf32, #tpu.memory_space<vmem>>, vector<16x32xf32>,
    return
  }
  func.func @transform_0(%arg0: i32, %arg1: i32) -> (i32, i32) {
    %c0_i32 = arith.constant 0 : i32
    %c0_i32_0 = arith.constant 0 : i32
    return %arg0, %c0_i32 : i32, i32
  }
  func.func @transform_1(%arg0: i32, %arg1: i32) -> (i32, i32) {
    %c0_i32 = arith.constant 0 : i32
    %c0_i32_0 = arith.constant 0 : i32
    %c0_i32_1 = arith.constant 0 : i32
    return %c0_i32, %c0_i32_0 : i32, i32
  }
  func.func @transform_2(%arg0: i32, %arg1: i32) -> (i32, i32) {
    %c0_i32 = arith.constant 0 : i32
    %c0_i32_0 = arith.constant 0 : i32
    %c0_i32_1 = arith.constant 0 : i32
    return %c0_i32, %c0_i32_0 : i32, i32
  }
  func.func @transform_3(%arg0: i32, %arg1: i32) -> (i32, i32) {
    %c0_i32 = arith.constant 0 : i32
    %c0_i32_0 = arith.constant 0 : i32
    return %c0_i32, %arg1 : i32, i32
  }
  func.func @transform_4(%arg0: i32, %arg1: i32) -> (i32, i32) {
    %c0_i32 = arith.constant 0 : i32
    %c0_i32_0 = arith.constant 0 : i32
    return %c0_i32, %arg1 : i32, i32
  }
  func.func @transform_5(%arg0: i32, %arg1: i32) -> (i32, i32) {
    %c0_i32 = arith.constant 0 : i32
    return %arg0, %arg1 : i32, i32
  }
}

</mosaic_0001>

<llo_original>
// kernel: tpu_custom_call.1
$region0: #{tpu_custom_call.1}
  #allocation0 [shape = 'u32[]', space=smem, size = 0x4, offset = 0x4, fixed_abs, tag = 'smem constant byte address 0x4 - core index']
  #allocation1 [shape = 'u32[144,128]{1,0:T(1,128)}', space=vmem, size = 0x12000, scoped, tag = 'internal scratch']
  %s0 = inlined_call_operand.hbm [shape: f32[18,32], index: 0, kind: input, shape index: {}]
  %s1 = inlined_call_operand.vmem [shape: f32[1,32], index: 1, kind: input, shape index: {}]
  %s2 = inlined_call_operand.vmem [shape: f32[1,32], index: 2, kind: input, shape index: {}]
  %s3 = inlined_call_operand.hbm [shape: f32[32,32], index: 3, kind: input, shape index: {}]
  %s4 = inlined_call_operand.vmem [shape: f32[1,32], index: 4, kind: input, shape index: {}]
  %s5 = inlined_call_operand.hbm [shape: f32[18,32], index: 5, kind: output, shape index: {}]
  %s6 = sld [smem:[#allocation0]]
  $region61: #{tpu_custom_call.1} parent=0
    _
  %s8 = ssub.s32 1, %s6
  %s9 = scalar_select 0, %s8, %s6
  $region1: #{tpu_custom_call.1} parent=0
    #allocation2 [shape = 'u8[16384]{0}', space=vmem, size = 0x4000, scoped, tag = 'input window, operand 0']
    #allocation3 [shape = 's32[2]{0}', space=sflag, size = 0x8, scoped, tag = 'scoped memory for tpu_custom_call.1']
    #allocation4 [shape = 's32[2]{0}', space=sflag, size = 0x8, scoped, tag = 'scoped memory for tpu_custom_call.1']
    #allocation5 [shape = 'u8[16384]{0}', space=vmem, size = 0x4000, scoped, tag = 'input window, operand 3, single buffered']
    #allocation6 [shape = 's32[1]{0}', space=sflag, size = 0x4, scoped, tag = 'scoped memory for tpu_custom_call.1']
    #allocation7 [shape = 'u8[16384]{0}', space=vmem, size = 0x4000, scoped, tag = 'output window, operand 0']
    %10 = vsyncpa [#allocation3], 0
    %s11 = scalar_lea.sflag [#allocation3], 1
    %12 = vsyncpa %s11, 0
    %13 = vsyncpa [#allocation6], 0
    %14 = vsyncpa [#allocation4], 0
    %s15 = scalar_lea.sflag [#allocation4], 1
    %16 = vsyncpa %s15, 0
    loop: start=0, step=1, limit=4
    $region2: #{tpu_custom_call.1} parent=1 // loop_pre_header
      _
    $region3: #{tpu_custom_call.1} parent=1 // loop_header
      %s18 = sphi 0, %s22
      %p19 = scmp.ge.s32.totalorder %s18, 4
      %s25 = sphi 0, %s37
      %s26 = sphi 0, %s33
      %s27 = sphi 0, %s25
      %s28 = sphi 0, %s26
      %s29 = sphi 0, %s27
      %s30 = sphi 0, %s28
      %s40 = sphi 0, %s42
      %s43 = sphi 0, %s40
      %s44 = sphi 0, %s43
      %s60 = sphi 0, %s44
      %s64 = sphi 0, %s64
      %s66 = sphi 0, %s64
      %s67 = sphi 0, %s66
      %s81 = sphi 0, %s67
      %s85 = sphi 0, %s85
      %s87 = sphi 0, %s85
      %s88 = sphi 0, %s87
      %s102 = sphi 0, %s88
      %s108 = sphi 0, %s110
      %s111 = sphi 0, %s108
      %s112 = sphi 0, %s111
      %s128 = sphi 0, %s112
      %s134 = sphi 0, %s136
      %s137 = sphi 0, %s134
      %s138 = sphi 0, %s137
      %s154 = sphi 0, %s138
      %s162 = sphi 0, %s164
      %s165 = sphi 0, %s162
      %s166 = sphi 0, %s165
      %s182 = sphi 0, %s166
    $region4: #{tpu_custom_call.1} parent=1 // loop_header_branch
      %21 = sbr.rel (%p19) target = $region8
    $region5: #{tpu_custom_call.1} parent=1 // loop_body
      %s23 = ssub.s32 %s18, 1
      %s24 = ssub.s32 %s18, 2
      %s31 = sadd.s32 1, %s26
      %p32 = scmp.ge.s32.totalorder %s31, 1
      %s33 = scalar_select %p32, 0, %s31
      %s34 = sadd.s32 1, %s25
      %s35 = scalar_select %p32, %s34, %s25
      %p36 = scmp.ge.s32.totalorder %s35, 2
      %s37 = scalar_select %p36, 0, %s35
      %s38 = ssub.s32 %s25, %s37
      %p39 = scmp.eq.s32.totalorder %s38, 0
      %s41 = sadd.s32 %s40, 1
      %s42 = scalar_select %p39, %s40, %s41
      %p45 = pneg %p39
      %p46 = scmp.eq.s32.totalorder %s18, 1
      %p47 = por %p45, %p46
      %p48 = scmp.ne.s32.totalorder %s40, %s43
      %p49 = scmp.eq.s32.totalorder %s18, 0
      %p50 = por %p48, %p49
      %p51 = scmp.ne.s32.totalorder %s40, %s43
      %p52 = scmp.eq.s32.totalorder %s23, 1
      %p53 = por %p51, %p52
      %p54 = scmp.ne.s32.totalorder %s43, %s44
      %p55 = scmp.eq.s32.totalorder %s23, 0
      %p56 = por %p54, %p55
      %p57 = scmp.ne.s32.totalorder %s43, %s44
      %p58 = scmp.eq.s32.totalorder %s24, 1
      %p59 = por %p57, %p58
      %p61 = scmp.ne.s32.totalorder %s44, %s60
      %p62 = scmp.eq.s32.totalorder %s24, 0
      %p63 = por %p61, %p62
      %s65 = sadd.s32 %s64, 1
      %p68 = scmp.eq.s32.totalorder %s18, 1
      %p69 = scmp.ne.s32.totalorder %s64, %s66
      %p70 = scmp.eq.s32.totalorder %s18, 0
      %p71 = por %p69, %p70
      %p72 = scmp.ne.s32.totalorder %s64, %s66
      %p73 = scmp.eq.s32.totalorder %s23, 1
      %p74 = por %p72, %p73
      %p75 = scmp.ne.s32.totalorder %s66, %s67
      %p76 = scmp.eq.s32.totalorder %s23, 0
      %p77 = por %p75, %p76
      %p78 = scmp.ne.s32.totalorder %s66, %s67
      %p79 = scmp.eq.s32.totalorder %s24, 1
      %p80 = por %p78, %p79
      %p82 = scmp.ne.s32.totalorder %s67, %s81
      %p83 = scmp.eq.s32.totalorder %s24, 0
      %p84 = por %p82, %p83
      %s86 = sadd.s32 %s85, 1
      %p89 = scmp.eq.s32.totalorder %s18, 1
      %p90 = scmp.ne.s32.totalorder %s85, %s87
      %p91 = scmp.eq.s32.totalorder %s18, 0
      %p92 = por %p90, %p91
      %p93 = scmp.ne.s32.totalorder %s85, %s87
      %p94 = scmp.eq.s32.totalorder %s23, 1
      %p95 = por %p93, %p94
      %p96 = scmp.ne.s32.totalorder %s87, %s88
      %p97 = scmp.eq.s32.totalorder %s23, 0
      %p98 = por %p96, %p97
      %p99 = scmp.ne.s32.totalorder %s87, %s88
      %p100 = scmp.eq.s32.totalorder %s24, 1
      %p101 = por %p99, %p100
      %p103 = scmp.ne.s32.totalorder %s88, %s102
      %p104 = scmp.eq.s32.totalorder %s24, 0
      %p105 = por %p103, %p104
      %s106 = ssub.s32 %s26, %s33
      %p107 = scmp.eq.s32.totalorder %s106, 0
      %s109 = sadd.s32 %s108, 1
      %s110 = scalar_select %p107, %s108, %s109
      %p113 = pneg %p107
      %p114 = scmp.eq.s32.totalorder %s18, 1
      %p115 = por %p113, %p114
      %p116 = scmp.ne.s32.totalorder %s108, %s111
      %p117 = scmp.eq.s32.totalorder %s18, 0
      %p118 = por %p116, %p117
      %p119 = scmp.ne.s32.totalorder %s108, %s111
      %p120 = scmp.eq.s32.totalorder %s23, 1
      %p121 = por %p119, %p120
      %p122 = scmp.ne.s32.totalorder %s111, %s112
      %p123 = scmp.eq.s32.totalorder %s23, 0
      %p124 = por %p122, %p123
      %p125 = scmp.ne.s32.totalorder %s111, %s112
      %p126 = scmp.eq.s32.totalorder %s24, 1
      %p127 = por %p125, %p126
      %p129 = scmp.ne.s32.totalorder %s112, %s128
      %p130 = scmp.eq.s32.totalorder %s24, 0
      %p131 = por %p129, %p130
      %s132 = ssub.s32 %s26, %s33
      %p133 = scmp.eq.s32.totalorder %s132, 0
      %s135 = sadd.s32 %s134, 1
      %s136 = scalar_select %p133, %s134, %s135
      %p139 = pneg %p133
      %p140 = scmp.eq.s32.totalorder %s18, 1
      %p141 = por %p139, %p140
      %p142 = scmp.ne.s32.totalorder %s134, %s137
      %p143 = scmp.eq.s32.totalorder %s18, 0
      %p144 = por %p142, %p143
      %p145 = scmp.ne.s32.totalorder %s134, %s137
      %p146 = scmp.eq.s32.totalorder %s23, 1
      %p147 = por %p145, %p146
      %p148 = scmp.ne.s32.totalorder %s137, %s138
      %p149 = scmp.eq.s32.totalorder %s23, 0
      %p150 = por %p148, %p149
      %p151 = scmp.ne.s32.totalorder %s137, %s138
      %p152 = scmp.eq.s32.totalorder %s24, 1
      %p153 = por %p151, %p152
      %p155 = scmp.ne.s32.totalorder %s138, %s154
      %p156 = scmp.eq.s32.totalorder %s24, 0
      %p157 = por %p155, %p156
      %s158 = ssub.s32 %s25, %s37
      %s159 = ssub.s32 %s26, %s33
      %s160 = sor.u32 %s158, %s159
      %p161 = scmp.eq.s32.totalorder %s160, 0
      %s163 = sadd.s32 %s162, 1
      %s164 = scalar_select %p161, %s162, %s163
      %p167 = pneg %p161
      %p168 = scmp.eq.s32.totalorder %s18, 1
      %p169 = por %p167, %p168
      %p170 = scmp.ne.s32.totalorder %s162, %s165
      %p171 = scmp.eq.s32.totalorder %s18, 0
      %p172 = por %p170, %p171
      %p173 = scmp.ne.s32.totalorder %s162, %s165
      %p174 = scmp.eq.s32.totalorder %s23, 1
      %p175 = por %p173, %p174
      %p176 = scmp.ne.s32.totalorder %s165, %s166
      %p177 = scmp.eq.s32.totalorder %s23, 0
      %p178 = por %p176, %p177
      %p179 = scmp.ne.s32.totalorder %s165, %s166
      %p180 = scmp.eq.s32.totalorder %s24, 1
      %p181 = por %p179, %p180
      %p183 = scmp.ne.s32.totalorder %s166, %s182
      %p184 = scmp.eq.s32.totalorder %s24, 0
      %p185 = por %p183, %p184
      %p186 = scmp.le.s32.totalorder 1, %s18
      %p187 = scmp.lt.s32.totalorder %s18, 3
      %p188 = pnand %p186, %p187
      %p189 = pneg %p188
      // Predicated region
      $region9: #{tpu_custom_call.1} parent=5 // pred_check
        _
      $region10: #{tpu_custom_call.1} parent=5 // pred_check_branch
        %191 = sbr.rel (%p188) target = $region12
      $region11: #{tpu_custom_call.1} parent=5 // pred_region
        %s192 = ssub.s32 %s18, 1
        // Predicated region
        $region13: #{tpu_custom_call.1} parent=11 // pred_check
          %p193 = pneg %p77
        $region14: #{tpu_custom_call.1} parent=11 // pred_check_branch
          %195 = sbr.rel (%p193) target = $region16
        $region15: #{tpu_custom_call.1} parent=11 // pred_region
          _
        $region16: #{tpu_custom_call.1} parent=11 // pred_fallthru
          _
        // Predicated region
        $region17: #{tpu_custom_call.1} parent=11 // pred_check
          %p196 = pneg %p98
        $region18: #{tpu_custom_call.1} parent=11 // pred_check_branch
          %198 = sbr.rel (%p196) target = $region20
        $region19: #{tpu_custom_call.1} parent=11 // pred_region
          _
        $region20: #{tpu_custom_call.1} parent=11 // pred_fallthru
          _
        // Predicated region
        $region21: #{tpu_custom_call.1} parent=11 // pred_check
          %p199 = pneg %p124
        $region22: #{tpu_custom_call.1} parent=11 // pred_check_branch
          %201 = sbr.rel (%p199) target = $region24
        $region23: #{tpu_custom_call.1} parent=11 // pred_region
          %s203 = ssub.s32 512, 512
          %204 = vsyncadd [#allocation6], %s203
          %s205 = smul.addr %s28, 128
          %s206 = scalar_lea.hbm %s3, %s205
          %s207 = sshll.u32 [#allocation5], 4
          %s208 = int_to_ptr.vmem [resolvable:$true] %s207
          %213 = dma.hbm_to_vmem [thread:$0]  %s206, 512, %s208, [#allocation6], 128, 128, 8
        $region24: #{tpu_custom_call.1} parent=11 // pred_fallthru
          _
        // Predicated region
        $region25: #{tpu_custom_call.1} parent=11 // pred_check
          %p214 = pneg %p150
        $region26: #{tpu_custom_call.1} parent=11 // pred_check_branch
          %216 = sbr.rel (%p214) target = $region28
        $region27: #{tpu_custom_call.1} parent=11 // pred_region
          %p217 = scmp.lt.s32.totalorder %s28, 0
          %s218 = scalar_select %p217, %s28, 0
          %s219 = scalar_lea.vmem %s4, %s218
        $region28: #{tpu_custom_call.1} parent=11 // pred_fallthru
          _
      $region12: #{tpu_custom_call.1} parent=5 // pred_fallthru
        _
      %p220 = scmp.lt.s32.totalorder %s18, 2
      // Predicated region
      $region29: #{tpu_custom_call.1} parent=5 // pred_check
        %p221 = pneg %p220
      $region30: #{tpu_custom_call.1} parent=5 // pred_check_branch
        %223 = sbr.rel (%p221) target = $region32
      $region31: #{tpu_custom_call.1} parent=5 // pred_region
        // Predicated region
        $region33: #{tpu_custom_call.1} parent=31 // pred_check
          %p224 = pneg %p50
        $region34: #{tpu_custom_call.1} parent=31 // pred_check_branch
          %226 = sbr.rel (%p224) target = $region36
        $region35: #{tpu_custom_call.1} parent=31 // pred_region
          %s227 = sand.u32 %s40, 1
          %s228 = scalar_lea.sflag [#allocation3], %s227
          %s229 = sand.u32 %s40, 1
          %s230 = smul.addr %s229, 16
          %s231 = scalar_lea.vmem [#allocation2], %s230
          %s232 = smul.u32 2, %s25
          %s233 = ssub.s32 3, %s232
          %p234 = scmp.lt.s32.totalorder %s233, 2
          %s235 = scalar_select %p234, %s233, 2
          %s236 = smul.u32 128, %s235
          %s238 = ssub.s32 256, %s236
          %239 = vsyncadd %s228, %s238
          %p240 = scmp.ne.s32.totalorder 0, %s236
          %s241 = smul.addr %s232, 128
          %s242 = scalar_lea.hbm %s0, %s241
          %s243 = smul.u32 8, %s235
          %s244 = sshll.u32 %s231, 4
          %s245 = int_to_ptr.vmem [resolvable:$true] %s244
          %s246 = sshll.u32 %s243, 4
          %250 = dma.hbm_to_vmem [thread:$0]  (%p240), %s242, %s246, %s245, %s228, 128, 128, 8
        $region36: #{tpu_custom_call.1} parent=31 // pred_fallthru
          _
      $region32: #{tpu_custom_call.1} parent=5 // pred_fallthru
        _
      %p251 = scmp.le.s32.totalorder 1, %s18
      %p252 = scmp.lt.s32.totalorder %s18, 3
      %p253 = pnand %p251, %p252
      %p254 = pneg %p253
      // Predicated region
      $region37: #{tpu_custom_call.1} parent=5 // pred_check
        _
      $region38: #{tpu_custom_call.1} parent=5 // pred_check_branch
        %256 = sbr.rel (%p253) target = $region40
      $region39: #{tpu_custom_call.1} parent=5 // pred_region
        %s257 = ssub.s32 %s18, 1
        %s258 = sand.u32 %s43, 1
        %s259 = scalar_lea.sflag [#allocation3], %s258
        %s260 = sand.u32 %s43, 1
        %s261 = smul.addr %s260, 16
        %s262 = scalar_lea.vmem [#allocation2], %s261
        // Predicated region
        $region41: #{tpu_custom_call.1} parent=39 // pred_check
          %p263 = pneg %p56
        $region42: #{tpu_custom_call.1} parent=39 // pred_check_branch
          %265 = sbr.rel (%p263) target = $region44
        $region43: #{tpu_custom_call.1} parent=39 // pred_region
          %266 = dma.done %s259, 256
        $region44: #{tpu_custom_call.1} parent=39 // pred_fallthru
          _
        // Predicated region
        $region45: #{tpu_custom_call.1} parent=39 // pred_check
          %p267 = pneg %p124
        $region46: #{tpu_custom_call.1} parent=39 // pred_check_branch
          %269 = sbr.rel (%p267) target = $region48
        $region47: #{tpu_custom_call.1} parent=39 // pred_region
          %270 = dma.done [#allocation6], 512
        $region48: #{tpu_custom_call.1} parent=39 // pred_fallthru
          _
        %s271 = sand.u32 %s43, 1
        %s272 = scalar_lea.sflag [#allocation3], %s271
        %s273 = sand.u32 %s43, 1
        %s274 = smul.addr %s273, 16
        %s275 = scalar_lea.vmem [#allocation2], %s274
        %p276 = pneg %p56
        %p277 = pneg %p53
        %p278 = pneg %p77
        %p279 = pneg %p74
        %p280 = pneg %p98
        %p281 = pneg %p95
        %p282 = pneg %p124
        %p283 = pneg %p121
        %p284 = scmp.lt.s32.totalorder %s28, 0
        %s285 = scalar_select %p284, %s28, 0
        %s286 = scalar_lea.vmem %s4, %s285
        %p287 = pneg %p150
        %p288 = pneg %p147
        %p289 = pneg %p178
        %p290 = pneg %p175
        %s291 = sand.u32 %s165, 1
        %s292 = scalar_lea.sflag [#allocation4], %s291
        %s293 = sand.u32 %s165, 1
        %s294 = smul.addr %s293, 16
        %s295 = scalar_lea.vmem [#allocation7], %s294
        %s296 = smul.u32 2, %s27
        %s297 = ssub.s32 3, %s296
        %p298 = scmp.lt.s32.totalorder %s297, 2
        %s299 = scalar_select %p298, %s297, 2
        %s300 = smul.u32 128, %s299
        %p301 = scmp.lt.s32.totalorder %s28, 0
        %s302 = scalar_select %p301, %s28, 0
        %s303 = scalar_lea.vmem %s4, %s302
        %s304 = smul.u32 2, %s27
        %s305 = ssub.s32 3, %s304
        %p306 = scmp.lt.s32.totalorder %s305, 2
        %s307 = scalar_select %p306, %s305, 2
        %s308 = smul.u32 128, %s307
        %v309 = vld [vmem:[%s262] sm:$0xff]
        %v310 = vld [vmem:[%s262 + $0x8] sm:$0xff]
        %vm311 = vcmask 261120
        %v312 = vsel %vm311, %v309, 0.0
        %313 = vadd.xlane.f32.xlu0 %v312
        %v314 = vpop.xlane.xlu0 %313
        %v315 = vsel %vm311, %v310, 0.0
        %316 = vadd.xlane.f32.xlu0 %v315
        %v317 = vpop.xlane.xlu0 %316
        %v318 = vrcp.pop 32.0
        %v319 = vmul.f32 %v314, %v318
        %v320 = vmul.f32 %v317, %v318
        %v321 = vmul.f32 %v309, %v309
        %v322 = vmul.f32 %v310, %v310
        %v323 = vsel %vm311, %v321, 0.0
        %324 = vadd.xlane.f32.xlu0 %v323
        %v325 = vpop.xlane.xlu0 %324
        %v326 = vsel %vm311, %v322, 0.0
        %327 = vadd.xlane.f32.xlu0 %v326
        %v328 = vpop.xlane.xlu0 %327
        %v329 = vmul.f32 %v325, %v318
        %v330 = vmul.f32 %v328, %v318
        %v331 = vmul.f32 %v319, %v319
        %v332 = vmul.f32 %v320, %v320
        %v333 = vsub.f32 %v329, %v331
        %v334 = vsub.f32 %v330, %v332
        %v335 = vmax.f32 %v333, 0.0
        %v336 = vmax.f32 %v334, 0.0
        %v337 = vsub.f32 %v309, %v319
        %v338 = vsub.f32 %v310, %v320
        %v339 = vadd.f32 %v335, 1e-05
        %v340 = vadd.f32 %v336, 1e-05
        %v341 = vrsqrt.pop %v339
        %v342 = vrsqrt.pop %v340
        %v343 = vmul.f32 %v337, %v341
        %v344 = vmul.f32 %v338, %v342
        %v345 = vld [vmem:[%s1] sm:$0x1]
        %v347 = vlaneseq
        %v348 = vshrl.u32 %v347, 7
        %v349 = vsub.s32 0, %v348
        %v350 = vrot.slane %v345, %v349
        %v352 = vmul.f32 %v343, %v350
        %v353 = vmul.f32 %v344, %v350
        %v354 = vld [vmem:[%s2] sm:$0x1]
        %v356 = vlaneseq
        %v357 = vshrl.u32 %v356, 7
        %v358 = vsub.s32 0, %v357
        %v359 = vrot.slane %v354, %v358
        %v361 = vadd.f32 %v352, %v359
        %v362 = vadd.f32 %v353, %v359
        %v363 = vld [vmem:[#allocation5] sm:$0xff]
        %v364 = vld [vmem:[#allocation5 + $0x8] sm:$0xff]
        %v365 = vld [vmem:[#allocation5 + $0x10] sm:$0xff]
        %v366 = vld [vmem:[#allocation5 + $0x18] sm:$0xff]
        %v367 = vld [vmem:[%s303] sm:$0x1]
        %v369 = vlaneseq
        %v370 = vshrl.u32 %v369, 7
        %v371 = vsub.s32 0, %v370
        %v372 = vrot.slane %v367, %v371
        %v375 = vsel %vm311, %v361, 0
        %v378 = vsel %vm311, %v362, 0
        %380 = vmatprep.subr.mxu0 0.0
        %381 = vmatpush1.msra.mxu0 %v363
        %382 = vmatprep.subr.mxu0 0.0
        %383 = vmatpush1.msra.mxu0 %v364
        %384 = vmatprep.subr.mxu0 0.0
        %385 = vmatpush1.msra.mxu0 %v365
        %386 = vmatprep.subr.mxu0 0.0
        %387 = vmatpush1.msra.mxu0 %v366
        %388 = vmatprep.subr.mxu0 0.0
        %389 = vmatpush1.msra.mxu0 0.0
        %390 = vmatprep.subr.mxu0 0.0
        %391 = vmatpush1.msra.mxu0 0.0
        %392 = vmatprep.subr.mxu0 0.0
        %393 = vmatpush1.msra.mxu0 0.0
        %394 = vmatprep.subr.mxu0 0.0
        %395 = vmatpush1.msra.mxu0 0.0
        %396 = vmatprep.subr.mxu0 0.0
        %397 = vmatpush1.msra.mxu0 0.0
        %398 = vmatprep.subr.mxu0 0.0
        %399 = vmatpush1.msra.mxu0 0.0
        %400 = vmatprep.subr.mxu0 0.0
        %401 = vmatpush1.msra.mxu0 0.0
        %402 = vmatprep.subr.mxu0 0.0
        %403 = vmatpush1.msra.mxu0 0.0
        %404 = vmatprep.subr.mxu0 0.0
        %405 = vmatpush1.msra.mxu0 0.0
        %406 = vmatprep.subr.mxu0 0.0
        %407 = vmatpush1.msra.mxu0 0.0
        %408 = vmatprep.subr.mxu0 0.0
        %409 = vmatpush1.msra.mxu0 0.0
        %410 = vmatprep.subr.mxu0 0.0
        %411 = vmatpush1.msra.mxu0 0.0
        %412 = vmatprep.subr.mxu0 0.0
        %413 = vmatpush1.msra.mxu0 0.0
        %414 = vmatprep.subr.mxu0 0.0
        %415 = vmatpush1.msra.mxu0 0.0
        %416 = vmatprep.subr.mxu0 0.0
        %417 = vmatpush1.msra.mxu0 0.0
        %418 = vmatprep.subr.mxu0 0.0
        %419 = vmatpush1.msra.mxu0 0.0
        %420 = vmatprep.subr.mxu0 0.0
        %421 = vmatpush1.msra.mxu0 0.0
        %422 = vmatprep.subr.mxu0 0.0
        %423 = vmatpush1.msra.mxu0 0.0
        %424 = vmatprep.subr.mxu0 0.0
        %425 = vmatpush1.msra.mxu0 0.0
        %426 = vmatprep.subr.mxu0 0.0
        %427 = vmatpush1.msra.mxu0 0.0
        %428 = vmatprep.subr.mxu0 0.0
        %429 = vmatpush1.msra.mxu0 0.0
        %430 = vmatprep.subr.mxu0 0.0
        %431 = vmatpush1.msra.mxu0 0.0
        %432 = vmatprep.subr.mxu0 0.0
        %433 = vmatpush1.msra.mxu0 0.0
        %434 = vmatprep.subr.mxu0 0.0
        %435 = vmatpush1.msra.mxu0 0.0
        %436 = vmatprep.subr.mxu0 0.0
        %437 = vmatpush1.msra.mxu0 0.0
        %438 = vmatprep.subr.mxu0 0.0
        %439 = vmatpush1.msra.mxu0 0.0
        %440 = vmatprep.subr.mxu0 0.0
        %441 = vmatpush1.msra.mxu0 0.0
        %442 = vmatprep.subr.mxu0 0.0
        %443 = vmatpush1.msra.mxu0 0.0
        %444 = vmatprep.mubr.f32.mxu0 0.0
        %445 = vmatmul.mubr.f32.gmra.mrb[0].mxu0 %v375
        %v446 = vpop.f32.mrb[0].mxu0
        %v447 = vadd.f32 %v372, %v446
        %v448 = vpop.f32.mrb[0].mxu0
        %449 = vmatprep.mubr.f32.mxu0 0.0
        %450 = vmatmul.mubr.f32.gmra.mrb[0].mxu0 %v378
        %v451 = vpop.f32.mrb[0].mxu0
        %v452 = vadd.f32 %v372, %v451
        %v453 = vpop.f32.mrb[0].mxu0
        %454 = vdwg.mxu0
        %455 = vst.msk [vmem:[%s295] sm:$0xff] %vm311, %v447
        %456 = vst.msk [vmem:[%s295 + $0x8] sm:$0xff] %vm311, %v452
        %s457 = sand.u32 %s165, 1
        %s458 = scalar_lea.sflag [#allocation4], %s457
        %s459 = sand.u32 %s165, 1
        %s460 = smul.addr %s459, 16
        %s461 = scalar_lea.vmem [#allocation7], %s460
        // Predicated region
        $region49: #{tpu_custom_call.1} parent=39 // pred_check
          %p462 = pneg %p175
        $region50: #{tpu_custom_call.1} parent=39 // pred_check_branch
          %464 = sbr.rel (%p462) target = $region52
        $region51: #{tpu_custom_call.1} parent=39 // pred_region
          %s465 = smul.u32 2, %s27
          %s466 = ssub.s32 3, %s465
          %p467 = scmp.lt.s32.totalorder %s466, 2
          %s468 = scalar_select %p467, %s466, 2
          %s469 = smul.u32 128, %s468
          %s471 = ssub.s32 256, %s469
          %472 = vsyncadd %s458, %s471
          %p473 = scmp.ne.s32.totalorder 0, %s469
          %s474 = sadd.s32 %s28, %s465
          %s475 = smul.addr %s474, 128
          %s476 = scalar_lea.hbm %s5, %s475
          %s477 = smul.u32 8, %s468
          %s478 = sshll.u32 %s461, 4
          %s479 = int_to_ptr.vmem [resolvable:$true] %s478
          %s480 = sshll.u32 %s477, 4
          %484 = dma.vmem_to_hbm [thread:$0]  (%p473), %s479, %s480, %s476, %s458, 128, 128, 8
        $region52: #{tpu_custom_call.1} parent=39 // pred_fallthru
          _
      $region40: #{tpu_custom_call.1} parent=5 // pred_fallthru
        _
      %p485 = scmp.le.s32.totalorder 2, %s18
      // Predicated region
      $region53: #{tpu_custom_call.1} parent=5 // pred_check
        %p486 = pneg %p485
      $region54: #{tpu_custom_call.1} parent=5 // pred_check_branch
        %488 = sbr.rel (%p486) target = $region56
      $region55: #{tpu_custom_call.1} parent=5 // pred_region
        %s489 = ssub.s32 %s18, 2
        // Predicated region
        $region57: #{tpu_custom_call.1} parent=55 // pred_check
          %p490 = pneg %p181
        $region58: #{tpu_custom_call.1} parent=55 // pred_check_branch
          %492 = sbr.rel (%p490) target = $region60
        $region59: #{tpu_custom_call.1} parent=55 // pred_region
          %s493 = sand.u32 %s166, 1
          %s494 = scalar_lea.sflag [#allocation4], %s493
          %s495 = sand.u32 %s166, 1
          %s496 = smul.addr %s495, 16
          %s497 = scalar_lea.vmem [#allocation7], %s496
          %498 = dma.done %s494, 256
        $region60: #{tpu_custom_call.1} parent=55 // pred_fallthru
          _
      $region56: #{tpu_custom_call.1} parent=5 // pred_fallthru
        _
    $region6: #{tpu_custom_call.1} parent=1 // loop_footer
      %s22 = sadd.s32 1, %s18
    $region7: #{tpu_custom_call.1} parent=1 // loop_footer_branch
      %17 = sbr.rel target = $region3
    $region8: #{tpu_custom_call.1} parent=1 // loop_exit
      _
    %499 = vsyncpa [#allocation3], 1
    %s500 = scalar_lea.sflag [#allocation3], 1
    %501 = vsyncpa %s500, 1
    %502 = vsyncpa [#allocation6], 1
    %503 = vsyncpa [#allocation4], 1
    %s504 = scalar_lea.sflag [#allocation4], 1
    %505 = vsyncpa %s504, 1

</llo_original>
